<compile_context>
chip_gen: v6e
topology: v6e:2x2x1
jax: 0.10.0
libtpu: 0.0.40
codegen_flags: <defaults>
</compile_context>

<pallas_src>
import functools

import jax
import jax.numpy as jnp
from jax import lax
from jax.experimental import pallas as pl
from jax.experimental.pallas import tpu as pltpu


LANES = 128
TARGET_BLOCK_BYTES = 4 * 1024 * 1024   # 4 MiB per input block -> 16 MiB double-buffered


def _round_up(x: int, m: int) -> int:
    return ((x + m - 1) // m) * m


def _mse_partial_kernel(p_ref, t_ref, o_ref, *, rows, tile_rows, tiles_per_chunk):
    """Accumulate partial sums of (p - t)^2 into a resident (8, cols) output block."""
    c = pl.program_id(0)   # chunk index ("parallel" axis)
    i = pl.program_id(1)   # tile within chunk ("arbitrary" reduction axis)

    @pl.when(i == 0)
    def _():
        o_ref[...] = jnp.zeros_like(o_ref)

    p = p_ref[...].astype(jnp.float32)
    t = t_ref[...].astype(jnp.float32)
    d = p - t
    sq = d * d

    def accumulate(vals):
        # (tile_rows, cols) -> (tile_rows//8, 8, cols): sublane-tile preserving reshape;
        # summing over the leading axis is pure vreg-wise VPU adds (no XLU, no masking).
        o_ref[...] += vals.reshape(-1, 8, vals.shape[-1]).sum(axis=0)

    # First global row covered by this tile (scalar int32).
    start_row = (c * tiles_per_chunk + i) * tile_rows

    # Fast path: tile lies fully inside the valid row range -> no masking at all.
    @pl.when(start_row + tile_rows <= rows)
    def _():
        accumulate(sq)

    # Ragged tile (or the clamped, fully out-of-range tile of the second chunk):
    # mask invalid rows with where() so stale-VMEM garbage (possibly NaN/Inf from the
    # partial DMA) never reaches the accumulator.
    @pl.when(start_row + tile_rows > rows)
    def _():
        row_ids = start_row + lax.broadcasted_iota(jnp.int32, sq.shape, 0)
        accumulate(jnp.where(row_ids < rows, sq, jnp.float32(0.0)))


def torch_loss_mse(prediction: jax.Array, target: jax.Array) -> jax.Array:
    """Equivalent of TorchLoss(loss='MSELoss').forward(prediction, target).

    prediction, target: (B, P, D) canonical layout (batch, positions, dims).
    Returns a scalar float32: mean squared error over all elements.
    """
    assert prediction.shape == target.shape, (prediction.shape, target.shape)
    n_total = int(prediction.size)
    itemsize = jnp.dtype(prediction.dtype).itemsize

    # --- zero-copy 2D view (reshape of a contiguous array is a bitcast, no HBM traffic)
    if n_total % LANES == 0:
        rows, cols = n_total // LANES, LANES            # fully lane-dense slab
    else:
        cols = int(prediction.shape[-1])                # (B*P, D) fallback, still no copy
        rows = n_total // cols
    p2 = prediction.reshape(rows, cols)
    t2 = target.reshape(rows, cols)

    # Sublane granule: 8 rows for 4-byte dtypes, 16 for bf16, 32 for 1-byte.
    granule = max(8, 32 // itemsize)
    cols_vmem = _round_up(cols, LANES)                  # VMEM lane footprint of one row
    budget_rows = max(
        granule,
        (TARGET_BLOCK_BYTES // (itemsize * cols_vmem)) // granule * granule,
    )

    # Two chunks on the leading "parallel" axis whenever there are >= 2 granules of
    # rows, so both v7x TensorCores pull HBM (no-op cost on single-TC v5e/v6e).
    # TODO(synk): if an xprof trace shows only one v7x core busy, switch the leading
    # axis to pltpu.CORE_PARALLEL (or pl.core_map over create_tensorcore_mesh).
    num_chunks = 2 if rows >= 2 * granule else 1
    tile_rows = min(budget_rows, _round_up(pl.cdiv(rows, num_chunks), granule))
    tiles_total = pl.cdiv(rows, tile_rows)
    tiles_per_chunk = pl.cdiv(tiles_total, num_chunks)
    grid = (num_chunks, tiles_per_chunk)

    def in_map(c, i):
        # Clamp: when tiles_total is odd the second chunk owns one tile index past the
        # data; it re-reads the last valid tile and the in-kernel row mask zeroes it.
        return (jnp.minimum(c * tiles_per_chunk + i, tiles_total - 1), 0)

    kernel = functools.partial(
        _mse_partial_kernel,
        rows=rows, tile_rows=tile_rows, tiles_per_chunk=tiles_per_chunk,
    )

    partials = pl.pallas_call(
        kernel,
        out_shape=jax.ShapeDtypeStruct((num_chunks, 8, cols), jnp.float32),
        grid_spec=pltpu.PrefetchScalarGridSpec(
            num_scalar_prefetch=0,
            grid=grid,
            in_specs=[
                pl.BlockSpec((tile_rows, cols), in_map),
                pl.BlockSpec((tile_rows, cols), in_map),
            ],
            # Same output block across the inner ("arbitrary") axis -> resident
            # accumulator; one small lane-dense writeback per chunk.
            out_specs=pl.BlockSpec((None, 8, cols), lambda c, i: (c, 0, 0)),
        ),
        compiler_params=pltpu.CompilerParams(
            dimension_semantics=("parallel", "arbitrary"),
            vmem_limit_bytes=32 * 1024 * 1024,
        ),
        cost_estimate=pl.CostEstimate(
            flops=3 * n_total,
            transcendentals=0,
            bytes_accessed=2 * n_total * itemsize + num_chunks * 8 * cols * 4,
        ),
    )(p2, t2)

    # Tiny final cross-lane reduce + mean scaling on (num_chunks, 8, cols) f32.
    return jnp.sum(partials) * jnp.float32(1.0 / n_total)


def _reference_mse(prediction, target):
    d = prediction.astype(jnp.float32) - target.astype(jnp.float32)
    return jnp.mean(d * d)


if __name__ == "__main__":
    key = jax.random.PRNGKey(0)

    # Small shapes consistent with the module's canonical (B, n_positions, n_dims).
    B, P, D = 2, 8, 32
    k_pred, k_tgt, k_pred2, k_tgt2 = jax.random.split(key, 4)
    prediction = jax.random.normal(k_pred, (B, P, D), dtype=jnp.float32)
    target = jax.random.normal(k_tgt, (B, P, D), dtype=jnp.float32)

    loss = jax.block_until_ready(torch_loss_mse(prediction, target))
    ref = jax.block_until_ready(_reference_mse(prediction, target))
    assert jnp.allclose(loss, ref, rtol=1e-5, atol=1e-6), (loss, ref)

    # Second check exercising the non-lane-aligned fallback path (total elems not % 128)
    # and the ragged-row in-kernel masking.
    B2, P2, D2 = 2, 7, 48
    prediction2 = jax.random.normal(k_pred2, (B2, P2, D2), dtype=jnp.float32)
    target2 = jax.random.normal(k_tgt2, (B2, P2, D2), dtype=jnp.float32)
    loss2 = jax.block_until_ready(torch_loss_mse(prediction2, target2))
    ref2 = jax.block_until_ready(_reference_mse(prediction2, target2))
    assert jnp.allclose(loss2, ref2, rtol=1e-5, atol=1e-6), (loss2, ref2)

    # TODO(synk): CrossEntropyLoss variant (positions_last transpose + class-index
    # targets) and the dict-path get_prediction/get_target plumbing are not implemented
    # here; this kernel reproduces the MSELoss forward pass.
    print("KERNEL_OK")
</pallas_src>

<mosaic_0001>
module attributes {stable_mosaic.version = 11 : i64} {
  func.func @_mse_partial_kernel(%arg0: i32, %arg1: i32, %arg2: memref<8x128xf32, #tpu.memory_space<vmem>>, %arg3: memref<8x128xf32, #tpu.memory_space<vmem>>, %arg4: memref<1x8x128xf32, #tpu.memory_space<vmem>>) attributes {dimension_semantics = [#tpu.dimension_semantics<parallel>, #tpu.dimension_semantics<arbitrary>], iteration_bounds = array<i64: 1, 1>, scalar_prefetch = 0 : i64, scratch_operands = 0 : i64, tpu.core_type = #tpu.core_type<tc>, window_params = [{transform_indices = @transform_0, window_bounds = array<i64: 8, 128>}, {transform_indices = @transform_1, window_bounds = array<i64: 8, 128>}, {transform_indices = @transform_2, window_bounds = array<i64: 1, 8, 128>}]} {
    %c0_i32 = arith.constant 0 : i32
    %0 = arith.cmpi eq, %arg1, %c0_i32 : i32
    %1 = arith.extui %0 : i1 to i32
    %c0_i32_0 = arith.constant 0 : i32
    %2 = arith.cmpi ne, %1, %c0_i32_0 : i32
    scf.if %2 {
      %cst = arith.constant 0.000000e+00 : f32
      %18 = vector.broadcast %cst : f32 to vector<8x128xf32>
      %c0_9 = arith.constant 0 : index
      %c0_10 = arith.constant 0 : index
      %c0_11 = arith.constant 0 : index
      %19 = vector.load %arg4[%c0_9, %c0_10, %c0_11] : memref<1x8x128xf32, #tpu.memory_space<vmem>>, vector<1x8x128xf32>
      %20 = vector.shape_cast %19 : vector<1x8x128xf32> to vector<8x128xf32>
      %21 = vector.shape_cast %18 : vector<8x128xf32> to vector<1x8x128xf32>
      tpu.vector_store %arg4[%c0_9, %c0_10, %c0_11], %21 {strides = array<i32>} : memref<1x8x128xf32, #tpu.memory_space<vmem>>, vector<1x8x128xf32>,
    } else {
    }
    %c0 = arith.constant 0 : index
    %c0_1 = arith.constant 0 : index
    %3 = vector.load %arg2[%c0, %c0_1] : memref<8x128xf32, #tpu.memory_space<vmem>>, vector<8x128xf32>
    %c0_2 = arith.constant 0 : index
    %c0_3 = arith.constant 0 : index
    %4 = vector.load %arg3[%c0_2, %c0_3] : memref<8x128xf32, #tpu.memory_space<vmem>>, vector<8x128xf32>
    %5 = arith.subf %3, %4 : vector<8x128xf32>
    %6 = arith.mulf %5, %5 : vector<8x128xf32>
    %c1_i32 = arith.constant 1 : i32
    %7 = arith.muli %arg0, %c1_i32 : i32
    %8 = arith.addi %7, %arg1 : i32
    %c8_i32 = arith.constant 8 : i32
    %9 = arith.muli %8, %c8_i32 : i32
    %c8_i32_4 = arith.constant 8 : i32
    %10 = arith.addi %9, %c8_i32_4 : i32
    %c4_i32 = arith.constant 4 : i32
    %11 = arith.cmpi sle, %10, %c4_i32 : i32
    %12 = arith.extui %11 : i1 to i32
    %c0_i32_5 = arith.constant 0 : i32
    %13 = arith.cmpi ne, %12, %c0_i32_5 : i32
    scf.if %13 {
      %c0_9 = arith.constant 0 : index
      %c0_10 = arith.constant 0 : index
      %c0_11 = arith.constant 0 : index
      %18 = vector.load %arg4[%c0_9, %c0_10, %c0_11] : memref<1x8x128xf32, #tpu.memory_space<vmem>>, vector<1x8x128xf32>
      %19 = vector.shape_cast %18 : vector<1x8x128xf32> to vector<8x128xf32>
      %20 = vector.shape_cast %6 : vector<8x128xf32> to vector<1x8x128xf32>
      %cst = arith.constant dense<0.000000e+00> : vector<8x128xf32>
      %21 = vector.multi_reduction <add>, %20, %cst [0] : vector<1x8x128xf32> to vector<8x128xf32>
      %22 = arith.addf %19, %21 : vector<8x128xf32>
      %c0_12 = arith.constant 0 : index
      %c0_13 = arith.constant 0 : index
      %c0_14 = arith.constant 0 : index
      %23 = vector.load %arg4[%c0_12, %c0_13, %c0_14] : memref<1x8x128xf32, #tpu.memory_space<vmem>>, vector<1x8x128xf32>
      %24 = vector.shape_cast %23 : vector<1x8x128xf32> to vector<8x128xf32>
      %25 = vector.shape_cast %22 : vector<8x128xf32> to vector<1x8x128xf32>
      tpu.vector_store %arg4[%c0_12, %c0_13, %c0_14], %25 {strides = array<i32>} : memref<1x8x128xf32, #tpu.memory_space<vmem>>, vector<1x8x128xf32>,
    } else {
    }
    %c8_i32_6 = arith.constant 8 : i32
    %14 = arith.addi %9, %c8_i32_6 : i32
    %c4_i32_7 = arith.constant 4 : i32
    %15 = arith.cmpi sgt, %14, %c4_i32_7 : i32
    %16 = arith.extui %15 : i1 to i32
    %c0_i32_8 = arith.constant 0 : i32
    %17 = arith.cmpi ne, %16, %c0_i32_8 : i32
    scf.if %17 {
      %18 = tpu.iota {dimensions = array<i32: 0>} : vector<8x128xi32>
      %19 = vector.broadcast %9 : i32 to vector<8x128xi32>
      %20 = arith.addi %19, %18 : vector<8x128xi32>
      %c4_i32_9 = arith.constant 4 : i32
      %21 = vector.broadcast %c4_i32_9 : i32 to vector<8x128xi32>
      %22 = arith.cmpi slt, %20, %21 : vector<8x128xi32>
      %cst = arith.constant 0.000000e+00 : f32
      %23 = vector.broadcast %cst : f32 to vector<8x128xf32>
      %24 = arith.select %22, %6, %23 : vector<8x128xi1>, vector<8x128xf32>
      %c0_10 = arith.constant 0 : index
      %c0_11 = arith.constant 0 : index
      %c0_12 = arith.constant 0 : index
      %25 = vector.load %arg4[%c0_10, %c0_11, %c0_12] : memref<1x8x128xf32, #tpu.memory_space<vmem>>, vector<1x8x128xf32>
      %26 = vector.shape_cast %25 : vector<1x8x128xf32> to vector<8x128xf32>
      %27 = vector.shape_cast %24 : vector<8x128xf32> to vector<1x8x128xf32>
      %cst_13 = arith.constant dense<0.000000e+00> : vector<8x128xf32>
      %28 = vector.multi_reduction <add>, %27, %cst_13 [0] : vector<1x8x128xf32> to vector<8x128xf32>
      %29 = arith.addf %26, %28 : vector<8x128xf32>
      %c0_14 = arith.constant 0 : index
      %c0_15 = arith.constant 0 : index
      %c0_16 = arith.constant 0 : index
      %30 = vector.load %arg4[%c0_14, %c0_15, %c0_16] : memref<1x8x128xf32, #tpu.memory_space<vmem>>, vector<1x8x128xf32>
      %31 = vector.shape_cast %30 : vector<1x8x128xf32> to vector<8x128xf32>
      %32 = vector.shape_cast %29 : vector<8x128xf32> to vector<1x8x128xf32>
      tpu.vector_store %arg4[%c0_14, %c0_15, %c0_16], %32 {strides = array<i32>} : memref<1x8x128xf32, #tpu.memory_space<vmem>>, vector<1x8x128xf32>,
    } else {
    }
    return
  }
  func.func @transform_0(%arg0: i32, %arg1: i32) -> (i32, i32) {
    %c1_i32 = arith.constant 1 : i32
    %0 = arith.muli %arg0, %c1_i32 : i32
    %1 = arith.addi %0, %arg1 : i32
    %c0_i32 = arith.constant 0 : i32
    %2 = arith.minsi %1, %c0_i32 : i32
    %c0_i32_0 = arith.constant 0 : i32
    %c0_i32_1 = arith.constant 0 : i32
    return %2, %c0_i32_0 : i32, i32
  }
  func.func @transform_1(%arg0: i32, %arg1: i32) -> (i32, i32) {
    %c1_i32 = arith.constant 1 : i32
    %0 = arith.muli %arg0, %c1_i32 : i32
    %1 = arith.addi %0, %arg1 : i32
    %c0_i32 = arith.constant 0 : i32
    %2 = arith.minsi %1, %c0_i32 : i32
    %c0_i32_0 = arith.constant 0 : i32
    %c0_i32_1 = arith.constant 0 : i32
    return %2, %c0_i32_0 : i32, i32
  }
  func.func @transform_2(%arg0: i32, %arg1: i32) -> (i32, i32, i32) {
    %c0_i32 = arith.constant 0 : i32
    %c0_i32_0 = arith.constant 0 : i32
    %c0_i32_1 = arith.constant 0 : i32
    return %arg0, %c0_i32, %c0_i32_0 : i32, i32, i32
  }
}

</mosaic_0001>

<llo_original>
// kernel: tpu_custom_call.1
$region0: #{tpu_custom_call.1}
  #allocation0 [shape = 'u32[]', space=smem, size = 0x4, offset = 0x4, fixed_abs, tag = 'smem constant byte address 0x4 - core index']
  #allocation1 [shape = 'u32[144,128]{1,0:T(1,128)}', space=vmem, size = 0x12000, scoped, tag = 'internal scratch']
  %s0 = inlined_call_operand.hbm [shape: f32[4,128], index: 0, kind: input, shape index: {}]
  %s1 = inlined_call_operand.hbm [shape: f32[4,128], index: 1, kind: input, shape index: {}]
  %s2 = inlined_call_operand.hbm [shape: f32[1,8,128], index: 2, kind: output, shape index: {}]
  %s3 = sld [smem:[#allocation0]]
  $region38: #{tpu_custom_call.1} parent=0
    _
  %s5 = ssub.s32 1, %s3
  %s6 = scalar_select 0, %s5, %s3
  $region1: #{tpu_custom_call.1} parent=0
    #allocation2 [shape = 'u8[4096]{0}', space=vmem, size = 0x1000, scoped, tag = 'input window, operand 0, single buffered']
    #allocation3 [shape = 's32[1]{0}', space=sflag, size = 0x4, scoped, tag = 'scoped memory for tpu_custom_call.1']
    #allocation4 [shape = 's32[1]{0}', space=sflag, size = 0x4, scoped, tag = 'scoped memory for tpu_custom_call.1']
    #allocation5 [shape = 'u8[4096]{0}', space=vmem, size = 0x1000, scoped, tag = 'input window, operand 1, single buffered']
    #allocation6 [shape = 's32[1]{0}', space=sflag, size = 0x4, scoped, tag = 'scoped memory for tpu_custom_call.1']
    #allocation7 [shape = 'u8[4096]{0}', space=vmem, size = 0x1000, scoped, tag = 'output window, operand 0, single buffered']
    %7 = vsyncpa [#allocation3], 0
    %8 = vsyncpa [#allocation6], 0
    %9 = vsyncpa [#allocation4], 0
    // Predicated region
    $region2: #{tpu_custom_call.1} parent=1 // pred_check
      _
    $region3: #{tpu_custom_call.1} parent=1 // pred_check_branch
      %11 = sbr.rel (0) target = $region5
    $region4: #{tpu_custom_call.1} parent=1 // pred_region
      %s12 = sadd.s32 0, 0
      %p13 = scmp.lt.s32.totalorder %s12, 0
      %s14 = scalar_select %p13, %s12, 0
      %s15 = smul.u32 2, %s14
      %s16 = ssub.s32 1, %s15
      %s17 = smul.u32 64, %s16
      %s19 = ssub.s32 128, %s17
      %20 = vsyncadd [#allocation3], %s19
      %p21 = scmp.ne.s32.totalorder 0, %s17
      %s22 = smul.addr %s15, 64
      %s23 = scalar_lea.hbm %s0, %s22
      %s24 = smul.u32 4, %s16
      %s25 = sshll.u32 [#allocation2], 4
      %s26 = int_to_ptr.vmem [resolvable:$true] %s25
      %s27 = sshll.u32 %s24, 4
      %31 = dma.hbm_to_vmem [thread:$0]  (%p21), %s23, %s27, %s26, [#allocation3], 64, 64, 4
    $region5: #{tpu_custom_call.1} parent=1 // pred_fallthru
      _
    // Predicated region
    $region6: #{tpu_custom_call.1} parent=1 // pred_check
      _
    $region7: #{tpu_custom_call.1} parent=1 // pred_check_branch
      %33 = sbr.rel (0) target = $region9
    $region8: #{tpu_custom_call.1} parent=1 // pred_region
      %s34 = sadd.s32 0, 0
      %p35 = scmp.lt.s32.totalorder %s34, 0
      %s36 = scalar_select %p35, %s34, 0
      %s37 = smul.u32 2, %s36
      %s38 = ssub.s32 1, %s37
      %s39 = smul.u32 64, %s38
      %s41 = ssub.s32 128, %s39
      %42 = vsyncadd [#allocation6], %s41
      %p43 = scmp.ne.s32.totalorder 0, %s39
      %s44 = smul.addr %s37, 64
      %s45 = scalar_lea.hbm %s1, %s44
      %s46 = smul.u32 4, %s38
      %s47 = sshll.u32 [#allocation5], 4
      %s48 = int_to_ptr.vmem [resolvable:$true] %s47
      %s49 = sshll.u32 %s46, 4
      %53 = dma.hbm_to_vmem [thread:$0]  (%p43), %s45, %s49, %s48, [#allocation6], 64, 64, 4
    $region9: #{tpu_custom_call.1} parent=1 // pred_fallthru
      _
    // Predicated region
    $region10: #{tpu_custom_call.1} parent=1 // pred_check
      _
    $region11: #{tpu_custom_call.1} parent=1 // pred_check_branch
      %55 = sbr.rel (0) target = $region13
    $region12: #{tpu_custom_call.1} parent=1 // pred_region
      %56 = dma.done [#allocation3], 128
    $region13: #{tpu_custom_call.1} parent=1 // pred_fallthru
      _
    // Predicated region
    $region14: #{tpu_custom_call.1} parent=1 // pred_check
      _
    $region15: #{tpu_custom_call.1} parent=1 // pred_check_branch
      %58 = sbr.rel (0) target = $region17
    $region16: #{tpu_custom_call.1} parent=1 // pred_region
      %59 = dma.done [#allocation6], 128
    $region17: #{tpu_custom_call.1} parent=1 // pred_fallthru
      _
    %s60 = sadd.s32 0, 0
    %p61 = scmp.lt.s32.totalorder %s60, 0
    %s62 = scalar_select %p61, %s60, 0
    %s63 = smul.u32 2, %s62
    %s64 = ssub.s32 1, %s63
    %s65 = smul.u32 64, %s64
    %s66 = sadd.s32 0, 0
    %p67 = scmp.lt.s32.totalorder %s66, 0
    %s68 = scalar_select %p67, %s66, 0
    %s69 = smul.u32 2, %s68
    %s70 = ssub.s32 1, %s69
    %s71 = smul.u32 64, %s70
    %p72 = scmp.eq.s32.totalorder 0, 0
    // Predicated region
    $region18: #{tpu_custom_call.1} parent=1 // pred_check
      %p73 = pneg %p72
    $region19: #{tpu_custom_call.1} parent=1 // pred_check_branch
      %75 = sbr.rel (%p73) target = $region21
    $region20: #{tpu_custom_call.1} parent=1 // pred_region
      %76 = vst [vmem:[#allocation7] sm:$0xff] 0.0
    $region21: #{tpu_custom_call.1} parent=1 // pred_fallthru
      _
    %v77 = vld [vmem:[#allocation2] sm:$0xff]
    %v78 = vld [vmem:[#allocation5] sm:$0xff]
    %v79 = vsub.f32 %v77, %v78
    %v80 = vmul.f32 %v79, %v79
    %s81 = sadd.s32 0, 0
    %s82 = smul.u32 %s81, 8
    %s83 = sadd.s32 %s82, 8
    %p84 = scmp.le.s32.totalorder %s83, 4
    // Predicated region
    $region22: #{tpu_custom_call.1} parent=1 // pred_check
      %p85 = pneg %p84
    $region23: #{tpu_custom_call.1} parent=1 // pred_check_branch
      %87 = sbr.rel (%p85) target = $region25
    $region24: #{tpu_custom_call.1} parent=1 // pred_region
      %v88 = vld [vmem:[#allocation7] sm:$0xff]
      %v89 = vadd.f32 %v80, 0.0
      %v90 = vadd.f32 %v88, %v89
      %91 = vst [vmem:[#allocation7] sm:$0xff] %v90
    $region25: #{tpu_custom_call.1} parent=1 // pred_fallthru
      _
    %p92 = scmp.gt.s32.totalorder %s83, 4
    // Predicated region
    $region26: #{tpu_custom_call.1} parent=1 // pred_check
      %p93 = pneg %p92
    $region27: #{tpu_custom_call.1} parent=1 // pred_check_branch
      %95 = sbr.rel (%p93) target = $region29
    $region28: #{tpu_custom_call.1} parent=1 // pred_region
      %v96 = vlaneseq
      %v97 = vshrl.u32 %v96, 7
      %v98 = vstv %s82
      %v99 = vadd.s32 %v98, %v97
      %vm100 = vcmp.lt.s32.totalorder %v99, 4
      %v101 = vsel %vm100, %v80, 0.0
      %v102 = vld [vmem:[#allocation7] sm:$0xff]
      %v103 = vadd.f32 %v101, 0.0
      %v104 = vadd.f32 %v102, %v103
      %105 = vst [vmem:[#allocation7] sm:$0xff] %v104
    $region29: #{tpu_custom_call.1} parent=1 // pred_fallthru
      _
    // Predicated region
    $region30: #{tpu_custom_call.1} parent=1 // pred_check
      _
    $region31: #{tpu_custom_call.1} parent=1 // pred_check_branch
      %107 = sbr.rel (0) target = $region33
    $region32: #{tpu_custom_call.1} parent=1 // pred_region
      %s109 = ssub.s32 128, 128
      %110 = vsyncadd [#allocation4], %s109
      %s112 = sshll.u32 [#allocation7], 4
      %s113 = int_to_ptr.vmem [resolvable:$true] %s112
      %115 = dma.vmem_to_hbm [thread:$0]  %s113, 128, %s2, [#allocation4]
    $region33: #{tpu_custom_call.1} parent=1 // pred_fallthru
      _
    // Predicated region
    $region34: #{tpu_custom_call.1} parent=1 // pred_check
      _
    $region35: #{tpu_custom_call.1} parent=1 // pred_check_branch
      %117 = sbr.rel (0) target = $region37
    $region36: #{tpu_custom_call.1} parent=1 // pred_region
      %118 = dma.done [#allocation4], 128
    $region37: #{tpu_custom_call.1} parent=1 // pred_fallthru
      _
    %119 = vsyncpa [#allocation3], 1
    %120 = vsyncpa [#allocation6], 1
    %121 = vsyncpa [#allocation4], 1

</llo_original>
